<compile_context>
chip_gen: v7x
topology: tpu7x:2x2x1
jax: 0.10.0
libtpu: 0.0.40
codegen_flags: <defaults>
</compile_context>

<pallas_src>
import functools
import math

import jax
import jax.numpy as jnp
from jax import lax
from jax.experimental import pallas as pl
from jax.experimental.pallas import tpu as pltpu


def _round_up(v: int, m: int) -> int:
    return ((v + m - 1) // m) * m


def _xy_columns(ks: int, n: int):
    """Flattened meshgrid as (n, 1) columns.

    Row-major flatten of torch.meshgrid(linspace(-1,1,ks), linspace(-1,1,ks),
    indexing='xy'): x varies with the column index, y with the row index.
    """
    idx = lax.broadcasted_iota(jnp.int32, (n, 1), 0)   # 0..n-1 down sublanes
    if ks & (ks - 1) == 0:
        shift = ks.bit_length() - 1
        row = jnp.right_shift(idx, shift)
        col = jnp.bitwise_and(idx, ks - 1)
    else:
        row = idx // ks
        col = idx % ks
    step = jnp.float32(2.0 / (ks - 1))
    x = col.astype(jnp.float32) * step - jnp.float32(1.0)
    y = row.astype(jnp.float32) * step - jnp.float32(1.0)
    return x, y


def _psf_rms_loss_kernel(psf_ref, out_ref, *, ks: int):
    # psf_ref: (3, n, bt) VMEM tile, batch lane-dense; out_ref: (1, bt) VMEM row.
    n = psf_ref.shape[1]
    bt = psf_ref.shape[2]

    psf = psf_ref[...].astype(jnp.float32)          # single in-VMEM cast
    psf_r, psf_g, psf_b = psf[0], psf[1], psf[2]    # (n, bt) each; leading-axis index is free
    x, y = _xy_columns(ks, n)                       # (n, 1), built in-kernel

    # Green-channel centroid, keepdims -> (1, bt) lane-dense, stays in vregs.
    inv_n = jnp.float32(1.0 / n)
    cx = jnp.sum(x * psf_g, axis=0, keepdims=True) * inv_n   # (1, bt)
    cy = jnp.sum(y * psf_g, axis=0, keepdims=True) * inv_n   # (1, bt)
    loss_center = (jnp.abs(cx) + jnp.abs(cy)) * jnp.float32(ks)

    # Radius from the shifted centroid. 1/sqrt(2) is folded into the final
    # (1, bt) row below (loss is linear in r) to drop one (n, bt) VPU vmul.
    dx = x - cx                                     # (n, bt)
    dy = y - cy
    r = jnp.sqrt(dx * dx + dy * dy)                 # (n, bt)

    # Weighted channel sums: keep on VPU+XLU. Do NOT convert to jnp.dot/pl.dot:
    # a (3,n)x(n,bt)-style matvec pads to full 128-wide MXU tiles and pays
    # MRF/MRB drain latency, and r is per-PSF so it can never become a
    # shared-RHS matmul even in the batched case.
    s0 = jnp.sum(psf_r * r, axis=0, keepdims=True)  # (1, bt)
    s1 = jnp.sum(psf_g * r, axis=0, keepdims=True)
    s2 = jnp.sum(psf_b * r, axis=0, keepdims=True)
    inv_sqrt2 = jnp.float32(1.0 / math.sqrt(2.0))
    loss_size = jnp.sqrt(s0 * s0 + s1 * s1 + s2 * s2) * inv_sqrt2

    out_ref[...] = loss_center + loss_size          # (1, bt) unmasked lane-dense store


def psf_rms_loss_batched(psf: jax.Array) -> jax.Array:
    """psf: [B, 3, ks, ks] -> [B] losses (float32), one PSFRMSLoss per PSF."""
    assert psf.ndim == 4 and psf.shape[1] == 3 and psf.shape[2] == psf.shape[3]
    B, _, ks, _ = psf.shape
    assert ks >= 2
    n = ks * ks

    # Pad the batch to a lane multiple; pick the largest block that divides it.
    # VMEM budget (v7x is tightest: 32 MiB scoped default): 2 buffers * 3 * n *
    # b_tile * dtype_bytes = 3 MiB at ks=16 / b_tile=512 / f32. Re-derive if ks
    # grows (ks=128 is ~192 KiB per PSF per buffer).
    b_pad = max(_round_up(B, 128), 128)
    b_tile = 128
    for cand in (512, 384, 256, 128):
        if b_pad % cand == 0:
            b_tile = cand
            break
    grid = (b_pad // b_tile,)

    psf_flat = psf.reshape(B, 3, n)
    if b_pad != B:
        psf_flat = jnp.pad(psf_flat, ((0, b_pad - B), (0, 0), (0, 0)))
    # Layout plumbing only: present a (3, n, B) slab so batch is lane-dense.
    # Keep the input dtype (bf16 PSFs halve the HBM->VMEM DMA bytes); the single
    # f32 upcast happens inside the kernel, in VMEM.
    psf_t = jnp.transpose(psf_flat, (1, 2, 0))      # (3, n, b_pad)

    out = pl.pallas_call(
        functools.partial(_psf_rms_loss_kernel, ks=ks),
        out_shape=jax.ShapeDtypeStruct((1, b_pad), jnp.float32),
        grid=grid,
        in_specs=[pl.BlockSpec((3, n, b_tile), lambda b: (0, 0, b))],
        out_specs=pl.BlockSpec((1, b_tile), lambda b: (0, b)),
        compiler_params=pltpu.CompilerParams(
            dimension_semantics=("parallel",)),     # shards batch across v7x's 2 TCs
    )(psf_t)
    return out[0, :B]


def psf_rms_loss(psf: jax.Array) -> jax.Array:
    """psf: [3, ks, ks] -> scalar loss (matches PSFRMSLoss.forward).

    Note: for a truly single PSF inside a larger jitted graph, the pure-JAX
    psf_rms_loss_ref is preferable (XLA fuses it into the PSF producer and
    avoids the custom-call/DMA boundary); the Pallas path is intended for
    batches of PSFs via psf_rms_loss_batched.
    """
    return psf_rms_loss_batched(psf[None])[0]


def psf_rms_loss_ref(psf: jax.Array) -> jax.Array:
    """Pure-JAX reference mirroring the PyTorch forward exactly."""
    ks = psf.shape[-1]
    lin = jnp.linspace(-1.0, 1.0, ks, dtype=jnp.float32)
    x = jnp.broadcast_to(lin[None, :], (ks, ks))   # indexing='xy'
    y = jnp.broadcast_to(lin[:, None], (ks, ks))
    psf = psf.astype(jnp.float32)
    cx = jnp.mean(x * psf[1])
    cy = jnp.mean(y * psf[1])
    loss_center = (jnp.abs(cx) + jnp.abs(cy)) * ks
    r = jnp.sqrt((x - cx) ** 2 + (y - cy) ** 2) / jnp.float32(math.sqrt(2.0))
    loss_size = jnp.sqrt(
        jnp.sum(psf[0] * r) ** 2 + jnp.sum(psf[1] * r) ** 2 + jnp.sum(psf[2] * r) ** 2
    )
    return loss_center + loss_size


if __name__ == "__main__":
    ks = 16
    B = 5
    key = jax.random.PRNGKey(0)
    psf = jax.random.uniform(key, (B, 3, ks, ks), dtype=jnp.float32)
    # Normalize each channel so it behaves like a PSF (sums to 1).
    psf = psf / jnp.sum(psf, axis=(2, 3), keepdims=True)

    # Batched Pallas path.
    losses = jax.block_until_ready(psf_rms_loss_batched(psf))
    refs = jax.block_until_ready(jax.vmap(psf_rms_loss_ref)(psf))
    assert losses.shape == (B,)
    assert jnp.allclose(losses, refs, rtol=1e-5, atol=1e-5), (losses, refs)

    # Single-PSF module-style forward (routes through the batched kernel).
    loss0 = jax.block_until_ready(psf_rms_loss(psf[0]))
    assert jnp.allclose(loss0, refs[0], rtol=1e-5, atol=1e-5), (loss0, refs[0])

    print("KERNEL_OK")
</pallas_src>

<mosaic_0001>
module attributes {stable_mosaic.version = 11 : i64} {
  func.func @_psf_rms_loss_kernel(%arg0: i32, %arg1: memref<3x256x128xf32, #tpu.memory_space<vmem>>, %arg2: memref<1x128xf32, #tpu.memory_space<vmem>>) attributes {dimension_semantics = [#tpu.dimension_semantics<parallel>], iteration_bounds = array<i64: 1>, scalar_prefetch = 0 : i64, scratch_operands = 0 : i64, tpu.core_type = #tpu.core_type<tc>, window_params = [{transform_indices = @transform_0, window_bounds = array<i64: 3, 256, 128>}, {transform_indices = @transform_1, window_bounds = array<i64: 1, 128>}]} {
    %c0 = arith.constant 0 : index
    %c0_0 = arith.constant 0 : index
    %c0_1 = arith.constant 0 : index
    %0 = vector.load %arg1[%c0, %c0_0, %c0_1] : memref<3x256x128xf32, #tpu.memory_space<vmem>>, vector<3x256x128xf32>
    %1 = vector.extract_strided_slice %0 {offsets = [0, 0, 0], sizes = [1, 256, 128], strides = [1, 1, 1]} : vector<3x256x128xf32> to vector<1x256x128xf32>
    %2 = vector.shape_cast %1 : vector<1x256x128xf32> to vector<256x128xf32>
    %3 = vector.extract_strided_slice %0 {offsets = [1, 0, 0], sizes = [1, 256, 128], strides = [1, 1, 1]} : vector<3x256x128xf32> to vector<1x256x128xf32>
    %4 = vector.shape_cast %3 : vector<1x256x128xf32> to vector<256x128xf32>
    %5 = vector.extract_strided_slice %0 {offsets = [2, 0, 0], sizes = [1, 256, 128], strides = [1, 1, 1]} : vector<3x256x128xf32> to vector<1x256x128xf32>
    %6 = vector.shape_cast %5 : vector<1x256x128xf32> to vector<256x128xf32>
    %7 = tpu.iota {dimensions = array<i32: 0>} : vector<256x1xi32>
    %c4_i32 = arith.constant 4 : i32
    %8 = vector.broadcast %c4_i32 : i32 to vector<256x1xi32>
    %9 = arith.shrsi %7, %8 : vector<256x1xi32>
    %c15_i32 = arith.constant 15 : i32
    %10 = vector.broadcast %c15_i32 : i32 to vector<256x1xi32>
    %11 = arith.andi %7, %10 : vector<256x1xi32>
    %12 = arith.sitofp %11 : vector<256x1xi32> to vector<256x1xf32>
    %cst = arith.constant 0.13333334 : f32
    %13 = vector.broadcast %cst : f32 to vector<256x1xf32>
    %14 = arith.mulf %12, %13 : vector<256x1xf32>
    %cst_2 = arith.constant 1.000000e+00 : f32
    %15 = vector.broadcast %cst_2 : f32 to vector<256x1xf32>
    %16 = arith.subf %14, %15 : vector<256x1xf32>
    %17 = arith.sitofp %9 : vector<256x1xi32> to vector<256x1xf32>
    %cst_3 = arith.constant 0.13333334 : f32
    %18 = vector.broadcast %cst_3 : f32 to vector<256x1xf32>
    %19 = arith.mulf %17, %18 : vector<256x1xf32>
    %cst_4 = arith.constant 1.000000e+00 : f32
    %20 = vector.broadcast %cst_4 : f32 to vector<256x1xf32>
    %21 = arith.subf %19, %20 : vector<256x1xf32>
    %22 = vector.broadcast %16 : vector<256x1xf32> to vector<256x128xf32>
    %23 = arith.mulf %22, %4 : vector<256x128xf32>
    %cst_5 = arith.constant dense<0.000000e+00> : vector<128xf32>
    %24 = vector.multi_reduction <add>, %23, %cst_5 [0] : vector<256x128xf32> to vector<128xf32>
    %25 = vector.shape_cast %24 : vector<128xf32> to vector<1x128xf32>
    %cst_6 = arith.constant 3.906250e-03 : f32
    %26 = vector.broadcast %cst_6 : f32 to vector<1x128xf32>
    %27 = arith.mulf %25, %26 : vector<1x128xf32>
    %28 = vector.broadcast %21 : vector<256x1xf32> to vector<256x128xf32>
    %29 = arith.mulf %28, %4 : vector<256x128xf32>
    %cst_7 = arith.constant dense<0.000000e+00> : vector<128xf32>
    %30 = vector.multi_reduction <add>, %29, %cst_7 [0] : vector<256x128xf32> to vector<128xf32>
    %31 = vector.shape_cast %30 : vector<128xf32> to vector<1x128xf32>
    %cst_8 = arith.constant 3.906250e-03 : f32
    %32 = vector.broadcast %cst_8 : f32 to vector<1x128xf32>
    %33 = arith.mulf %31, %32 : vector<1x128xf32>
    %34 = math.absf %27 : vector<1x128xf32>
    %35 = math.absf %33 : vector<1x128xf32>
    %36 = arith.addf %34, %35 : vector<1x128xf32>
    %cst_9 = arith.constant 1.600000e+01 : f32
    %37 = vector.broadcast %cst_9 : f32 to vector<1x128xf32>
    %38 = arith.mulf %36, %37 : vector<1x128xf32>
    %39 = vector.broadcast %16 : vector<256x1xf32> to vector<256x128xf32>
    %40 = vector.broadcast %27 : vector<1x128xf32> to vector<256x128xf32>
    %41 = arith.subf %39, %40 : vector<256x128xf32>
    %42 = vector.broadcast %21 : vector<256x1xf32> to vector<256x128xf32>
    %43 = vector.broadcast %33 : vector<1x128xf32> to vector<256x128xf32>
    %44 = arith.subf %42, %43 : vector<256x128xf32>
    %45 = arith.mulf %41, %41 : vector<256x128xf32>
    %46 = arith.mulf %44, %44 : vector<256x128xf32>
    %47 = arith.addf %45, %46 : vector<256x128xf32>
    %48 = math.sqrt %47 : vector<256x128xf32>
    %49 = arith.mulf %2, %48 : vector<256x128xf32>
    %cst_10 = arith.constant dense<0.000000e+00> : vector<128xf32>
    %50 = vector.multi_reduction <add>, %49, %cst_10 [0] : vector<256x128xf32> to vector<128xf32>
    %51 = vector.shape_cast %50 : vector<128xf32> to vector<1x128xf32>
    %52 = arith.mulf %4, %48 : vector<256x128xf32>
    %cst_11 = arith.constant dense<0.000000e+00> : vector<128xf32>
    %53 = vector.multi_reduction <add>, %52, %cst_11 [0] : vector<256x128xf32> to vector<128xf32>
    %54 = vector.shape_cast %53 : vector<128xf32> to vector<1x128xf32>
    %55 = arith.mulf %6, %48 : vector<256x128xf32>
    %cst_12 = arith.constant dense<0.000000e+00> : vector<128xf32>
    %56 = vector.multi_reduction <add>, %55, %cst_12 [0] : vector<256x128xf32> to vector<128xf32>
    %57 = vector.shape_cast %56 : vector<128xf32> to vector<1x128xf32>
    %58 = arith.mulf %51, %51 : vector<1x128xf32>
    %59 = arith.mulf %54, %54 : vector<1x128xf32>
    %60 = arith.addf %58, %59 : vector<1x128xf32>
    %61 = arith.mulf %57, %57 : vector<1x128xf32>
    %62 = arith.addf %60, %61 : vector<1x128xf32>
    %63 = math.sqrt %62 : vector<1x128xf32>
    %cst_13 = arith.constant 0.707106769 : f32
    %64 = vector.broadcast %cst_13 : f32 to vector<1x128xf32>
    %65 = arith.mulf %63, %64 : vector<1x128xf32>
    %66 = arith.addf %38, %65 : vector<1x128xf32>
    %c0_14 = arith.constant 0 : index
    %c0_15 = arith.constant 0 : index
    %67 = vector.load %arg2[%c0_14, %c0_15] : memref<1x128xf32, #tpu.memory_space<vmem>>, vector<1x128xf32>
    tpu.vector_store %arg2[%c0_14, %c0_15], %66 {strides = array<i32>} : memref<1x128xf32, #tpu.memory_space<vmem>>, vector<1x128xf32>,
    return
  }
  func.func @transform_0(%arg0: i32) -> (i32, i32, i32) {
    %c0_i32 = arith.constant 0 : i32
    %c0_i32_0 = arith.constant 0 : i32
    %c0_i32_1 = arith.constant 0 : i32
    return %c0_i32, %c0_i32_0, %arg0 : i32, i32, i32
  }
  func.func @transform_1(%arg0: i32) -> (i32, i32) {
    %c0_i32 = arith.constant 0 : i32
    %c0_i32_0 = arith.constant 0 : i32
    return %c0_i32, %arg0 : i32, i32
  }
}

</mosaic_0001>

<llo_original>
// kernel: tpu_custom_call.1
$region0: #{tpu_custom_call.1}
  #allocation0 [shape = 'u32[]', space=smem, size = 0x4, offset = 0x4, fixed_abs, tag = 'smem constant byte address 0x4 - core index']
  #allocation1 [shape = 'u32[144,128]{1,0:T(1,128)}', space=vmem, size = 0x12000, scoped, tag = 'internal scratch']
  %s0 = inlined_call_operand.hbm [shape: f32[3,256,128], index: 0, kind: input, shape index: {}]
  %s1 = inlined_call_operand.hbm [shape: f32[1,128], index: 1, kind: output, shape index: {}]
  %s2 = sld [smem:[#allocation0]]
  $region18: #{tpu_custom_call.1} parent=0
    _
  %s4 = ssub.s32 1, %s2
  %s5 = scalar_select 0, %s4, %s2
  $region1: #{tpu_custom_call.1} parent=0
    #allocation2 [shape = 'u8[393216]{0}', space=vmem, size = 0x60000, scoped, tag = 'input window, operand 0, single buffered']
    #allocation3 [shape = 's32[1]{0}', space=sflag, size = 0x4, scoped, tag = 'scoped memory for tpu_custom_call.1']
    #allocation4 [shape = 's32[1]{0}', space=sflag, size = 0x4, scoped, tag = 'scoped memory for tpu_custom_call.1']
    #allocation5 [shape = 'u8[512]{0}', space=vmem, size = 0x400, scoped, tag = 'output window, operand 0, single buffered']
    %6 = vsyncpa [#allocation3], 0
    %7 = vsyncpa [#allocation4], 0
    // Predicated region
    $region2: #{tpu_custom_call.1} parent=1 // pred_check
      _
    $region3: #{tpu_custom_call.1} parent=1 // pred_check_branch
      %9 = sbr.rel (0) target = $region5
    $region4: #{tpu_custom_call.1} parent=1 // pred_region
      %s11 = ssub.s32 12288, 12288
      %12 = vsyncadd [#allocation3], %s11
      %s13 = sshll.u32 [#allocation2], 4
      %s14 = int_to_ptr.vmem [resolvable:$true] %s13
      %19 = dma.hbm_to_vmem [thread:$0]  %s0, 12288, %s14, [#allocation3], 128, 128, 8
    $region5: #{tpu_custom_call.1} parent=1 // pred_fallthru
      _
    // Predicated region
    $region6: #{tpu_custom_call.1} parent=1 // pred_check
      _
    $region7: #{tpu_custom_call.1} parent=1 // pred_check_branch
      %21 = sbr.rel (0) target = $region9
    $region8: #{tpu_custom_call.1} parent=1 // pred_region
      %22 = dma.done [#allocation3], 12288
    $region9: #{tpu_custom_call.1} parent=1 // pred_fallthru
      _
    %v23 = vld [vmem:[#allocation2] sm:$0xff]
    %v24 = vld [vmem:[#allocation2 + $0x8] sm:$0xff]
    %v25 = vld [vmem:[#allocation2 + $0x10] sm:$0xff]
    %v26 = vld [vmem:[#allocation2 + $0x18] sm:$0xff]
    %v27 = vld [vmem:[#allocation2 + $0x20] sm:$0xff]
    %v28 = vld [vmem:[#allocation2 + $0x28] sm:$0xff]
    %v29 = vld [vmem:[#allocation2 + $0x30] sm:$0xff]
    %v30 = vld [vmem:[#allocation2 + $0x38] sm:$0xff]
    %v31 = vld [vmem:[#allocation2 + $0x40] sm:$0xff]
    %v32 = vld [vmem:[#allocation2 + $0x48] sm:$0xff]
    %v33 = vld [vmem:[#allocation2 + $0x50] sm:$0xff]
    %v34 = vld [vmem:[#allocation2 + $0x58] sm:$0xff]
    %v35 = vld [vmem:[#allocation2 + $0x60] sm:$0xff]
    %v36 = vld [vmem:[#allocation2 + $0x68] sm:$0xff]
    %v37 = vld [vmem:[#allocation2 + $0x70] sm:$0xff]
    %v38 = vld [vmem:[#allocation2 + $0x78] sm:$0xff]
    %v39 = vld [vmem:[#allocation2 + $0x80] sm:$0xff]
    %v40 = vld [vmem:[#allocation2 + $0x88] sm:$0xff]
    %v41 = vld [vmem:[#allocation2 + $0x90] sm:$0xff]
    %v42 = vld [vmem:[#allocation2 + $0x98] sm:$0xff]
    %v43 = vld [vmem:[#allocation2 + $0xa0] sm:$0xff]
    %v44 = vld [vmem:[#allocation2 + $0xa8] sm:$0xff]
    %v45 = vld [vmem:[#allocation2 + $0xb0] sm:$0xff]
    %v46 = vld [vmem:[#allocation2 + $0xb8] sm:$0xff]
    %v47 = vld [vmem:[#allocation2 + $0xc0] sm:$0xff]
    %v48 = vld [vmem:[#allocation2 + $0xc8] sm:$0xff]
    %v49 = vld [vmem:[#allocation2 + $0xd0] sm:$0xff]
    %v50 = vld [vmem:[#allocation2 + $0xd8] sm:$0xff]
    %v51 = vld [vmem:[#allocation2 + $0xe0] sm:$0xff]
    %v52 = vld [vmem:[#allocation2 + $0xe8] sm:$0xff]
    %v53 = vld [vmem:[#allocation2 + $0xf0] sm:$0xff]
    %v54 = vld [vmem:[#allocation2 + $0xf8] sm:$0xff]
    %v55 = vld [vmem:[#allocation2 + $0x100] sm:$0xff]
    %v56 = vld [vmem:[#allocation2 + $0x108] sm:$0xff]
    %v57 = vld [vmem:[#allocation2 + $0x110] sm:$0xff]
    %v58 = vld [vmem:[#allocation2 + $0x118] sm:$0xff]
    %v59 = vld [vmem:[#allocation2 + $0x120] sm:$0xff]
    %v60 = vld [vmem:[#allocation2 + $0x128] sm:$0xff]
    %v61 = vld [vmem:[#allocation2 + $0x130] sm:$0xff]
    %v62 = vld [vmem:[#allocation2 + $0x138] sm:$0xff]
    %v63 = vld [vmem:[#allocation2 + $0x140] sm:$0xff]
    %v64 = vld [vmem:[#allocation2 + $0x148] sm:$0xff]
    %v65 = vld [vmem:[#allocation2 + $0x150] sm:$0xff]
    %v66 = vld [vmem:[#allocation2 + $0x158] sm:$0xff]
    %v67 = vld [vmem:[#allocation2 + $0x160] sm:$0xff]
    %v68 = vld [vmem:[#allocation2 + $0x168] sm:$0xff]
    %v69 = vld [vmem:[#allocation2 + $0x170] sm:$0xff]
    %v70 = vld [vmem:[#allocation2 + $0x178] sm:$0xff]
    %v71 = vld [vmem:[#allocation2 + $0x180] sm:$0xff]
    %v72 = vld [vmem:[#allocation2 + $0x188] sm:$0xff]
    %v73 = vld [vmem:[#allocation2 + $0x190] sm:$0xff]
    %v74 = vld [vmem:[#allocation2 + $0x198] sm:$0xff]
    %v75 = vld [vmem:[#allocation2 + $0x1a0] sm:$0xff]
    %v76 = vld [vmem:[#allocation2 + $0x1a8] sm:$0xff]
    %v77 = vld [vmem:[#allocation2 + $0x1b0] sm:$0xff]
    %v78 = vld [vmem:[#allocation2 + $0x1b8] sm:$0xff]
    %v79 = vld [vmem:[#allocation2 + $0x1c0] sm:$0xff]
    %v80 = vld [vmem:[#allocation2 + $0x1c8] sm:$0xff]
    %v81 = vld [vmem:[#allocation2 + $0x1d0] sm:$0xff]
    %v82 = vld [vmem:[#allocation2 + $0x1d8] sm:$0xff]
    %v83 = vld [vmem:[#allocation2 + $0x1e0] sm:$0xff]
    %v84 = vld [vmem:[#allocation2 + $0x1e8] sm:$0xff]
    %v85 = vld [vmem:[#allocation2 + $0x1f0] sm:$0xff]
    %v86 = vld [vmem:[#allocation2 + $0x1f8] sm:$0xff]
    %v87 = vld [vmem:[#allocation2 + $0x200] sm:$0xff]
    %v88 = vld [vmem:[#allocation2 + $0x208] sm:$0xff]
    %v89 = vld [vmem:[#allocation2 + $0x210] sm:$0xff]
    %v90 = vld [vmem:[#allocation2 + $0x218] sm:$0xff]
    %v91 = vld [vmem:[#allocation2 + $0x220] sm:$0xff]
    %v92 = vld [vmem:[#allocation2 + $0x228] sm:$0xff]
    %v93 = vld [vmem:[#allocation2 + $0x230] sm:$0xff]
    %v94 = vld [vmem:[#allocation2 + $0x238] sm:$0xff]
    %v95 = vld [vmem:[#allocation2 + $0x240] sm:$0xff]
    %v96 = vld [vmem:[#allocation2 + $0x248] sm:$0xff]
    %v97 = vld [vmem:[#allocation2 + $0x250] sm:$0xff]
    %v98 = vld [vmem:[#allocation2 + $0x258] sm:$0xff]
    %v99 = vld [vmem:[#allocation2 + $0x260] sm:$0xff]
    %v100 = vld [vmem:[#allocation2 + $0x268] sm:$0xff]
    %v101 = vld [vmem:[#allocation2 + $0x270] sm:$0xff]
    %v102 = vld [vmem:[#allocation2 + $0x278] sm:$0xff]
    %v103 = vld [vmem:[#allocation2 + $0x280] sm:$0xff]
    %v104 = vld [vmem:[#allocation2 + $0x288] sm:$0xff]
    %v105 = vld [vmem:[#allocation2 + $0x290] sm:$0xff]
    %v106 = vld [vmem:[#allocation2 + $0x298] sm:$0xff]
    %v107 = vld [vmem:[#allocation2 + $0x2a0] sm:$0xff]
    %v108 = vld [vmem:[#allocation2 + $0x2a8] sm:$0xff]
    %v109 = vld [vmem:[#allocation2 + $0x2b0] sm:$0xff]
    %v110 = vld [vmem:[#allocation2 + $0x2b8] sm:$0xff]
    %v111 = vld [vmem:[#allocation2 + $0x2c0] sm:$0xff]
    %v112 = vld [vmem:[#allocation2 + $0x2c8] sm:$0xff]
    %v113 = vld [vmem:[#allocation2 + $0x2d0] sm:$0xff]
    %v114 = vld [vmem:[#allocation2 + $0x2d8] sm:$0xff]
    %v115 = vld [vmem:[#allocation2 + $0x2e0] sm:$0xff]
    %v116 = vld [vmem:[#allocation2 + $0x2e8] sm:$0xff]
    %v117 = vld [vmem:[#allocation2 + $0x2f0] sm:$0xff]
    %v118 = vld [vmem:[#allocation2 + $0x2f8] sm:$0xff]
    %v119 = vlaneseq
    %v120 = vshrl.u32 %v119, 7
    %v121 = vadd.s32 %v120, 8
    %v122 = vadd.s32 %v120, 16
    %v123 = vadd.s32 %v120, 24
    %v124 = vadd.s32 %v120, 32
    %v125 = vadd.s32 %v120, 40
    %v126 = vadd.s32 %v120, 48
    %v127 = vadd.s32 %v120, 56
    %v128 = vadd.s32 %v120, 64
    %v129 = vadd.s32 %v120, 72
    %v130 = vadd.s32 %v120, 80
    %v131 = vadd.s32 %v120, 88
    %v132 = vadd.s32 %v120, 96
    %v133 = vadd.s32 %v120, 104
    %v134 = vadd.s32 %v120, 112
    %v135 = vadd.s32 %v120, 120
    %v136 = vadd.s32 %v120, 128
    %v137 = vadd.s32 %v120, 136
    %v138 = vadd.s32 %v120, 144
    %v139 = vadd.s32 %v120, 152
    %v140 = vadd.s32 %v120, 160
    %v141 = vadd.s32 %v120, 168
    %v142 = vadd.s32 %v120, 176
    %v143 = vadd.s32 %v120, 184
    %v144 = vadd.s32 %v120, 192
    %v145 = vadd.s32 %v120, 200
    %v146 = vadd.s32 %v120, 208
    %v147 = vadd.s32 %v120, 216
    %v148 = vadd.s32 %v120, 224
    %v149 = vadd.s32 %v120, 232
    %v150 = vadd.s32 %v120, 240
    %v151 = vadd.s32 %v120, 248
    %v152 = vshra.s32 %v120, 4
    %v153 = vshra.s32 %v121, 4
    %v154 = vshra.s32 %v122, 4
    %v155 = vshra.s32 %v123, 4
    %v156 = vshra.s32 %v124, 4
    %v157 = vshra.s32 %v125, 4
    %v158 = vshra.s32 %v126, 4
    %v159 = vshra.s32 %v127, 4
    %v160 = vshra.s32 %v128, 4
    %v161 = vshra.s32 %v129, 4
    %v162 = vshra.s32 %v130, 4
    %v163 = vshra.s32 %v131, 4
    %v164 = vshra.s32 %v132, 4
    %v165 = vshra.s32 %v133, 4
    %v166 = vshra.s32 %v134, 4
    %v167 = vshra.s32 %v135, 4
    %v168 = vshra.s32 %v136, 4
    %v169 = vshra.s32 %v137, 4
    %v170 = vshra.s32 %v138, 4
    %v171 = vshra.s32 %v139, 4
    %v172 = vshra.s32 %v140, 4
    %v173 = vshra.s32 %v141, 4
    %v174 = vshra.s32 %v142, 4
    %v175 = vshra.s32 %v143, 4
    %v176 = vshra.s32 %v144, 4
    %v177 = vshra.s32 %v145, 4
    %v178 = vshra.s32 %v146, 4
    %v179 = vshra.s32 %v147, 4
    %v180 = vshra.s32 %v148, 4
    %v181 = vshra.s32 %v149, 4
    %v182 = vshra.s32 %v150, 4
    %v183 = vshra.s32 %v151, 4
    %v184 = vand.u32 %v120, 15
    %v185 = vand.u32 %v121, 15
    %v186 = vand.u32 %v122, 15
    %v187 = vand.u32 %v123, 15
    %v188 = vand.u32 %v124, 15
    %v189 = vand.u32 %v125, 15
    %v190 = vand.u32 %v126, 15
    %v191 = vand.u32 %v127, 15
    %v192 = vand.u32 %v128, 15
    %v193 = vand.u32 %v129, 15
    %v194 = vand.u32 %v130, 15
    %v195 = vand.u32 %v131, 15
    %v196 = vand.u32 %v132, 15
    %v197 = vand.u32 %v133, 15
    %v198 = vand.u32 %v134, 15
    %v199 = vand.u32 %v135, 15
    %v200 = vand.u32 %v136, 15
    %v201 = vand.u32 %v137, 15
    %v202 = vand.u32 %v138, 15
    %v203 = vand.u32 %v139, 15
    %v204 = vand.u32 %v140, 15
    %v205 = vand.u32 %v141, 15
    %v206 = vand.u32 %v142, 15
    %v207 = vand.u32 %v143, 15
    %v208 = vand.u32 %v144, 15
    %v209 = vand.u32 %v145, 15
    %v210 = vand.u32 %v146, 15
    %v211 = vand.u32 %v147, 15
    %v212 = vand.u32 %v148, 15
    %v213 = vand.u32 %v149, 15
    %v214 = vand.u32 %v150, 15
    %v215 = vand.u32 %v151, 15
    %v216 = vcvt.s32.f32 %v184
    %v217 = vcvt.s32.f32 %v185
    %v218 = vcvt.s32.f32 %v186
    %v219 = vcvt.s32.f32 %v187
    %v220 = vcvt.s32.f32 %v188
    %v221 = vcvt.s32.f32 %v189
    %v222 = vcvt.s32.f32 %v190
    %v223 = vcvt.s32.f32 %v191
    %v224 = vcvt.s32.f32 %v192
    %v225 = vcvt.s32.f32 %v193
    %v226 = vcvt.s32.f32 %v194
    %v227 = vcvt.s32.f32 %v195
    %v228 = vcvt.s32.f32 %v196
    %v229 = vcvt.s32.f32 %v197
    %v230 = vcvt.s32.f32 %v198
    %v231 = vcvt.s32.f32 %v199
    %v232 = vcvt.s32.f32 %v200
    %v233 = vcvt.s32.f32 %v201
    %v234 = vcvt.s32.f32 %v202
    %v235 = vcvt.s32.f32 %v203
    %v236 = vcvt.s32.f32 %v204
    %v237 = vcvt.s32.f32 %v205
    %v238 = vcvt.s32.f32 %v206
    %v239 = vcvt.s32.f32 %v207
    %v240 = vcvt.s32.f32 %v208
    %v241 = vcvt.s32.f32 %v209
    %v242 = vcvt.s32.f32 %v210
    %v243 = vcvt.s32.f32 %v211
    %v244 = vcvt.s32.f32 %v212
    %v245 = vcvt.s32.f32 %v213
    %v246 = vcvt.s32.f32 %v214
    %v247 = vcvt.s32.f32 %v215
    %v248 = vmul.f32 %v216, 0.13333334
    %v249 = vmul.f32 %v217, 0.13333334
    %v250 = vmul.f32 %v218, 0.13333334
    %v251 = vmul.f32 %v219, 0.13333334
    %v252 = vmul.f32 %v220, 0.13333334
    %v253 = vmul.f32 %v221, 0.13333334
    %v254 = vmul.f32 %v222, 0.13333334
    %v255 = vmul.f32 %v223, 0.13333334
    %v256 = vmul.f32 %v224, 0.13333334
    %v257 = vmul.f32 %v225, 0.13333334
    %v258 = vmul.f32 %v226, 0.13333334
    %v259 = vmul.f32 %v227, 0.13333334
    %v260 = vmul.f32 %v228, 0.13333334
    %v261 = vmul.f32 %v229, 0.13333334
    %v262 = vmul.f32 %v230, 0.13333334
    %v263 = vmul.f32 %v231, 0.13333334
    %v264 = vmul.f32 %v232, 0.13333334
    %v265 = vmul.f32 %v233, 0.13333334
    %v266 = vmul.f32 %v234, 0.13333334
    %v267 = vmul.f32 %v235, 0.13333334
    %v268 = vmul.f32 %v236, 0.13333334
    %v269 = vmul.f32 %v237, 0.13333334
    %v270 = vmul.f32 %v238, 0.13333334
    %v271 = vmul.f32 %v239, 0.13333334
    %v272 = vmul.f32 %v240, 0.13333334
    %v273 = vmul.f32 %v241, 0.13333334
    %v274 = vmul.f32 %v242, 0.13333334
    %v275 = vmul.f32 %v243, 0.13333334
    %v276 = vmul.f32 %v244, 0.13333334
    %v277 = vmul.f32 %v245, 0.13333334
    %v278 = vmul.f32 %v246, 0.13333334
    %v279 = vmul.f32 %v247, 0.13333334
    %v280 = vsub.f32 %v248, 1.0
    %v281 = vsub.f32 %v249, 1.0
    %v282 = vsub.f32 %v250, 1.0
    %v283 = vsub.f32 %v251, 1.0
    %v284 = vsub.f32 %v252, 1.0
    %v285 = vsub.f32 %v253, 1.0
    %v286 = vsub.f32 %v254, 1.0
    %v287 = vsub.f32 %v255, 1.0
    %v288 = vsub.f32 %v256, 1.0
    %v289 = vsub.f32 %v257, 1.0
    %v290 = vsub.f32 %v258, 1.0
    %v291 = vsub.f32 %v259, 1.0
    %v292 = vsub.f32 %v260, 1.0
    %v293 = vsub.f32 %v261, 1.0
    %v294 = vsub.f32 %v262, 1.0
    %v295 = vsub.f32 %v263, 1.0
    %v296 = vsub.f32 %v264, 1.0
    %v297 = vsub.f32 %v265, 1.0
    %v298 = vsub.f32 %v266, 1.0
    %v299 = vsub.f32 %v267, 1.0
    %v300 = vsub.f32 %v268, 1.0
    %v301 = vsub.f32 %v269, 1.0
    %v302 = vsub.f32 %v270, 1.0
    %v303 = vsub.f32 %v271, 1.0
    %v304 = vsub.f32 %v272, 1.0
    %v305 = vsub.f32 %v273, 1.0
    %v306 = vsub.f32 %v274, 1.0
    %v307 = vsub.f32 %v275, 1.0
    %v308 = vsub.f32 %v276, 1.0
    %v309 = vsub.f32 %v277, 1.0
    %v310 = vsub.f32 %v278, 1.0
    %v311 = vsub.f32 %v279, 1.0
    %v312 = vcvt.s32.f32 %v152
    %v313 = vcvt.s32.f32 %v153
    %v314 = vcvt.s32.f32 %v154
    %v315 = vcvt.s32.f32 %v155
    %v316 = vcvt.s32.f32 %v156
    %v317 = vcvt.s32.f32 %v157
    %v318 = vcvt.s32.f32 %v158
    %v319 = vcvt.s32.f32 %v159
    %v320 = vcvt.s32.f32 %v160
    %v321 = vcvt.s32.f32 %v161
    %v322 = vcvt.s32.f32 %v162
    %v323 = vcvt.s32.f32 %v163
    %v324 = vcvt.s32.f32 %v164
    %v325 = vcvt.s32.f32 %v165
    %v326 = vcvt.s32.f32 %v166
    %v327 = vcvt.s32.f32 %v167
    %v328 = vcvt.s32.f32 %v168
    %v329 = vcvt.s32.f32 %v169
    %v330 = vcvt.s32.f32 %v170
    %v331 = vcvt.s32.f32 %v171
    %v332 = vcvt.s32.f32 %v172
    %v333 = vcvt.s32.f32 %v173
    %v334 = vcvt.s32.f32 %v174
    %v335 = vcvt.s32.f32 %v175
    %v336 = vcvt.s32.f32 %v176
    %v337 = vcvt.s32.f32 %v177
    %v338 = vcvt.s32.f32 %v178
    %v339 = vcvt.s32.f32 %v179
    %v340 = vcvt.s32.f32 %v180
    %v341 = vcvt.s32.f32 %v181
    %v342 = vcvt.s32.f32 %v182
    %v343 = vcvt.s32.f32 %v183
    %v344 = vmul.f32 %v312, 0.13333334
    %v345 = vmul.f32 %v313, 0.13333334
    %v346 = vmul.f32 %v314, 0.13333334
    %v347 = vmul.f32 %v315, 0.13333334
    %v348 = vmul.f32 %v316, 0.13333334
    %v349 = vmul.f32 %v317, 0.13333334
    %v350 = vmul.f32 %v318, 0.13333334
    %v351 = vmul.f32 %v319, 0.13333334
    %v352 = vmul.f32 %v320, 0.13333334
    %v353 = vmul.f32 %v321, 0.13333334
    %v354 = vmul.f32 %v322, 0.13333334
    %v355 = vmul.f32 %v323, 0.13333334
    %v356 = vmul.f32 %v324, 0.13333334
    %v357 = vmul.f32 %v325, 0.13333334
    %v358 = vmul.f32 %v326, 0.13333334
    %v359 = vmul.f32 %v327, 0.13333334
    %v360 = vmul.f32 %v328, 0.13333334
    %v361 = vmul.f32 %v329, 0.13333334
    %v362 = vmul.f32 %v330, 0.13333334
    %v363 = vmul.f32 %v331, 0.13333334
    %v364 = vmul.f32 %v332, 0.13333334
    %v365 = vmul.f32 %v333, 0.13333334
    %v366 = vmul.f32 %v334, 0.13333334
    %v367 = vmul.f32 %v335, 0.13333334
    %v368 = vmul.f32 %v336, 0.13333334
    %v369 = vmul.f32 %v337, 0.13333334
    %v370 = vmul.f32 %v338, 0.13333334
    %v371 = vmul.f32 %v339, 0.13333334
    %v372 = vmul.f32 %v340, 0.13333334
    %v373 = vmul.f32 %v341, 0.13333334
    %v374 = vmul.f32 %v342, 0.13333334
    %v375 = vmul.f32 %v343, 0.13333334
    %v376 = vsub.f32 %v344, 1.0
    %v377 = vsub.f32 %v345, 1.0
    %v378 = vsub.f32 %v346, 1.0
    %v379 = vsub.f32 %v347, 1.0
    %v380 = vsub.f32 %v348, 1.0
    %v381 = vsub.f32 %v349, 1.0
    %v382 = vsub.f32 %v350, 1.0
    %v383 = vsub.f32 %v351, 1.0
    %v384 = vsub.f32 %v352, 1.0
    %v385 = vsub.f32 %v353, 1.0
    %v386 = vsub.f32 %v354, 1.0
    %v387 = vsub.f32 %v355, 1.0
    %v388 = vsub.f32 %v356, 1.0
    %v389 = vsub.f32 %v357, 1.0
    %v390 = vsub.f32 %v358, 1.0
    %v391 = vsub.f32 %v359, 1.0
    %v392 = vsub.f32 %v360, 1.0
    %v393 = vsub.f32 %v361, 1.0
    %v394 = vsub.f32 %v362, 1.0
    %v395 = vsub.f32 %v363, 1.0
    %v396 = vsub.f32 %v364, 1.0
    %v397 = vsub.f32 %v365, 1.0
    %v398 = vsub.f32 %v366, 1.0
    %v399 = vsub.f32 %v367, 1.0
    %v400 = vsub.f32 %v368, 1.0
    %v401 = vsub.f32 %v369, 1.0
    %v402 = vsub.f32 %v370, 1.0
    %v403 = vsub.f32 %v371, 1.0
    %v404 = vsub.f32 %v372, 1.0
    %v405 = vsub.f32 %v373, 1.0
    %v406 = vsub.f32 %v374, 1.0
    %v407 = vsub.f32 %v375, 1.0
    %v408 = vmul.f32 %v280, %v55
    %v409 = vmul.f32 %v281, %v56
    %v410 = vmul.f32 %v282, %v57
    %v411 = vmul.f32 %v283, %v58
    %v412 = vmul.f32 %v284, %v59
    %v413 = vmul.f32 %v285, %v60
    %v414 = vmul.f32 %v286, %v61
    %v415 = vmul.f32 %v287, %v62
    %v416 = vmul.f32 %v288, %v63
    %v417 = vmul.f32 %v289, %v64
    %v418 = vmul.f32 %v290, %v65
    %v419 = vmul.f32 %v291, %v66
    %v420 = vmul.f32 %v292, %v67
    %v421 = vmul.f32 %v293, %v68
    %v422 = vmul.f32 %v294, %v69
    %v423 = vmul.f32 %v295, %v70
    %v424 = vmul.f32 %v296, %v71
    %v425 = vmul.f32 %v297, %v72
    %v426 = vmul.f32 %v298, %v73
    %v427 = vmul.f32 %v299, %v74
    %v428 = vmul.f32 %v300, %v75
    %v429 = vmul.f32 %v301, %v76
    %v430 = vmul.f32 %v302, %v77
    %v431 = vmul.f32 %v303, %v78
    %v432 = vmul.f32 %v304, %v79
    %v433 = vmul.f32 %v305, %v80
    %v434 = vmul.f32 %v306, %v81
    %v435 = vmul.f32 %v307, %v82
    %v436 = vmul.f32 %v308, %v83
    %v437 = vmul.f32 %v309, %v84
    %v438 = vmul.f32 %v310, %v85
    %v439 = vmul.f32 %v311, %v86
    %v440 = vadd.f32 %v408, %v409
    %v441 = vadd.f32 %v440, %v410
    %v442 = vadd.f32 %v441, %v411
    %v443 = vadd.f32 %v442, %v412
    %v444 = vadd.f32 %v443, %v413
    %v445 = vadd.f32 %v444, %v414
    %v446 = vadd.f32 %v445, %v415
    %v447 = vadd.f32 %v446, %v416
    %v448 = vadd.f32 %v447, %v417
    %v449 = vadd.f32 %v448, %v418
    %v450 = vadd.f32 %v449, %v419
    %v451 = vadd.f32 %v450, %v420
    %v452 = vadd.f32 %v451, %v421
    %v453 = vadd.f32 %v452, %v422
    %v454 = vadd.f32 %v453, %v423
    %v455 = vadd.f32 %v454, %v424
    %v456 = vadd.f32 %v455, %v425
    %v457 = vadd.f32 %v456, %v426
    %v458 = vadd.f32 %v457, %v427
    %v459 = vadd.f32 %v458, %v428
    %v460 = vadd.f32 %v459, %v429
    %v461 = vadd.f32 %v460, %v430
    %v462 = vadd.f32 %v461, %v431
    %v463 = vadd.f32 %v462, %v432
    %v464 = vadd.f32 %v463, %v433
    %v465 = vadd.f32 %v464, %v434
    %v466 = vadd.f32 %v465, %v435
    %v467 = vadd.f32 %v466, %v436
    %v468 = vadd.f32 %v467, %v437
    %v469 = vadd.f32 %v468, %v438
    %v470 = vadd.f32 %v469, %v439
    %v471 = vrot.slane %v470, 4
    %v472 = vadd.f32 %v470, %v471
    %v473 = vrot.slane %v472, 2
    %v474 = vadd.f32 %v472, %v473
    %v475 = vrot.slane %v474, 1
    %v476 = vadd.f32 %v474, %v475
    %v477 = vmul.f32 %v476, 0.00390625
    %v478 = vmul.f32 %v376, %v55
    %v479 = vmul.f32 %v377, %v56
    %v480 = vmul.f32 %v378, %v57
    %v481 = vmul.f32 %v379, %v58
    %v482 = vmul.f32 %v380, %v59
    %v483 = vmul.f32 %v381, %v60
    %v484 = vmul.f32 %v382, %v61
    %v485 = vmul.f32 %v383, %v62
    %v486 = vmul.f32 %v384, %v63
    %v487 = vmul.f32 %v385, %v64
    %v488 = vmul.f32 %v386, %v65
    %v489 = vmul.f32 %v387, %v66
    %v490 = vmul.f32 %v388, %v67
    %v491 = vmul.f32 %v389, %v68
    %v492 = vmul.f32 %v390, %v69
    %v493 = vmul.f32 %v391, %v70
    %v494 = vmul.f32 %v392, %v71
    %v495 = vmul.f32 %v393, %v72
    %v496 = vmul.f32 %v394, %v73
    %v497 = vmul.f32 %v395, %v74
    %v498 = vmul.f32 %v396, %v75
    %v499 = vmul.f32 %v397, %v76
    %v500 = vmul.f32 %v398, %v77
    %v501 = vmul.f32 %v399, %v78
    %v502 = vmul.f32 %v400, %v79
    %v503 = vmul.f32 %v401, %v80
    %v504 = vmul.f32 %v402, %v81
    %v505 = vmul.f32 %v403, %v82
    %v506 = vmul.f32 %v404, %v83
    %v507 = vmul.f32 %v405, %v84
    %v508 = vmul.f32 %v406, %v85
    %v509 = vmul.f32 %v407, %v86
    %v510 = vadd.f32 %v478, %v479
    %v511 = vadd.f32 %v510, %v480
    %v512 = vadd.f32 %v511, %v481
    %v513 = vadd.f32 %v512, %v482
    %v514 = vadd.f32 %v513, %v483
    %v515 = vadd.f32 %v514, %v484
    %v516 = vadd.f32 %v515, %v485
    %v517 = vadd.f32 %v516, %v486
    %v518 = vadd.f32 %v517, %v487
    %v519 = vadd.f32 %v518, %v488
    %v520 = vadd.f32 %v519, %v489
    %v521 = vadd.f32 %v520, %v490
    %v522 = vadd.f32 %v521, %v491
    %v523 = vadd.f32 %v522, %v492
    %v524 = vadd.f32 %v523, %v493
    %v525 = vadd.f32 %v524, %v494
    %v526 = vadd.f32 %v525, %v495
    %v527 = vadd.f32 %v526, %v496
    %v528 = vadd.f32 %v527, %v497
    %v529 = vadd.f32 %v528, %v498
    %v530 = vadd.f32 %v529, %v499
    %v531 = vadd.f32 %v530, %v500
    %v532 = vadd.f32 %v531, %v501
    %v533 = vadd.f32 %v532, %v502
    %v534 = vadd.f32 %v533, %v503
    %v535 = vadd.f32 %v534, %v504
    %v536 = vadd.f32 %v535, %v505
    %v537 = vadd.f32 %v536, %v506
    %v538 = vadd.f32 %v537, %v507
    %v539 = vadd.f32 %v538, %v508
    %v540 = vadd.f32 %v539, %v509
    %v541 = vrot.slane %v540, 4
    %v542 = vadd.f32 %v540, %v541
    %v543 = vrot.slane %v542, 2
    %v544 = vadd.f32 %v542, %v543
    %v545 = vrot.slane %v544, 1
    %v546 = vadd.f32 %v544, %v545
    %v547 = vmul.f32 %v546, 0.00390625
    %v548 = vand.u32 2147483647, %v477
    %v549 = vand.u32 2147483647, %v547
    %v550 = vadd.f32 %v548, %v549
    %v551 = vmul.f32 %v550, 16.0
    %v552 = vsub.f32 %v280, %v477
    %v553 = vsub.f32 %v281, %v477
    %v554 = vsub.f32 %v282, %v477
    %v555 = vsub.f32 %v283, %v477
    %v556 = vsub.f32 %v284, %v477
    %v557 = vsub.f32 %v285, %v477
    %v558 = vsub.f32 %v286, %v477
    %v559 = vsub.f32 %v287, %v477
    %v560 = vsub.f32 %v288, %v477
    %v561 = vsub.f32 %v289, %v477
    %v562 = vsub.f32 %v290, %v477
    %v563 = vsub.f32 %v291, %v477
    %v564 = vsub.f32 %v292, %v477
    %v565 = vsub.f32 %v293, %v477
    %v566 = vsub.f32 %v294, %v477
    %v567 = vsub.f32 %v295, %v477
    %v568 = vsub.f32 %v296, %v477
    %v569 = vsub.f32 %v297, %v477
    %v570 = vsub.f32 %v298, %v477
    %v571 = vsub.f32 %v299, %v477
    %v572 = vsub.f32 %v300, %v477
    %v573 = vsub.f32 %v301, %v477
    %v574 = vsub.f32 %v302, %v477
    %v575 = vsub.f32 %v303, %v477
    %v576 = vsub.f32 %v304, %v477
    %v577 = vsub.f32 %v305, %v477
    %v578 = vsub.f32 %v306, %v477
    %v579 = vsub.f32 %v307, %v477
    %v580 = vsub.f32 %v308, %v477
    %v581 = vsub.f32 %v309, %v477
    %v582 = vsub.f32 %v310, %v477
    %v583 = vsub.f32 %v311, %v477
    %v584 = vsub.f32 %v376, %v547
    %v585 = vsub.f32 %v377, %v547
    %v586 = vsub.f32 %v378, %v547
    %v587 = vsub.f32 %v379, %v547
    %v588 = vsub.f32 %v380, %v547
    %v589 = vsub.f32 %v381, %v547
    %v590 = vsub.f32 %v382, %v547
    %v591 = vsub.f32 %v383, %v547
    %v592 = vsub.f32 %v384, %v547
    %v593 = vsub.f32 %v385, %v547
    %v594 = vsub.f32 %v386, %v547
    %v595 = vsub.f32 %v387, %v547
    %v596 = vsub.f32 %v388, %v547
    %v597 = vsub.f32 %v389, %v547
    %v598 = vsub.f32 %v390, %v547
    %v599 = vsub.f32 %v391, %v547
    %v600 = vsub.f32 %v392, %v547
    %v601 = vsub.f32 %v393, %v547
    %v602 = vsub.f32 %v394, %v547
    %v603 = vsub.f32 %v395, %v547
    %v604 = vsub.f32 %v396, %v547
    %v605 = vsub.f32 %v397, %v547
    %v606 = vsub.f32 %v398, %v547
    %v607 = vsub.f32 %v399, %v547
    %v608 = vsub.f32 %v400, %v547
    %v609 = vsub.f32 %v401, %v547
    %v610 = vsub.f32 %v402, %v547
    %v611 = vsub.f32 %v403, %v547
    %v612 = vsub.f32 %v404, %v547
    %v613 = vsub.f32 %v405, %v547
    %v614 = vsub.f32 %v406, %v547
    %v615 = vsub.f32 %v407, %v547
    %v616 = vmul.f32 %v552, %v552
    %v617 = vmul.f32 %v553, %v553
    %v618 = vmul.f32 %v554, %v554
    %v619 = vmul.f32 %v555, %v555
    %v620 = vmul.f32 %v556, %v556
    %v621 = vmul.f32 %v557, %v557
    %v622 = vmul.f32 %v558, %v558
    %v623 = vmul.f32 %v559, %v559
    %v624 = vmul.f32 %v560, %v560
    %v625 = vmul.f32 %v561, %v561
    %v626 = vmul.f32 %v562, %v562
    %v627 = vmul.f32 %v563, %v563
    %v628 = vmul.f32 %v564, %v564
    %v629 = vmul.f32 %v565, %v565
    %v630 = vmul.f32 %v566, %v566
    %v631 = vmul.f32 %v567, %v567
    %v632 = vmul.f32 %v568, %v568
    %v633 = vmul.f32 %v569, %v569
    %v634 = vmul.f32 %v570, %v570
    %v635 = vmul.f32 %v571, %v571
    %v636 = vmul.f32 %v572, %v572
    %v637 = vmul.f32 %v573, %v573
    %v638 = vmul.f32 %v574, %v574
    %v639 = vmul.f32 %v575, %v575
    %v640 = vmul.f32 %v576, %v576
    %v641 = vmul.f32 %v577, %v577
    %v642 = vmul.f32 %v578, %v578
    %v643 = vmul.f32 %v579, %v579
    %v644 = vmul.f32 %v580, %v580
    %v645 = vmul.f32 %v581, %v581
    %v646 = vmul.f32 %v582, %v582
    %v647 = vmul.f32 %v583, %v583
    %v648 = vmul.f32 %v584, %v584
    %v649 = vmul.f32 %v585, %v585
    %v650 = vmul.f32 %v586, %v586
    %v651 = vmul.f32 %v587, %v587
    %v652 = vmul.f32 %v588, %v588
    %v653 = vmul.f32 %v589, %v589
    %v654 = vmul.f32 %v590, %v590
    %v655 = vmul.f32 %v591, %v591
    %v656 = vmul.f32 %v592, %v592
    %v657 = vmul.f32 %v593, %v593
    %v658 = vmul.f32 %v594, %v594
    %v659 = vmul.f32 %v595, %v595
    %v660 = vmul.f32 %v596, %v596
    %v661 = vmul.f32 %v597, %v597
    %v662 = vmul.f32 %v598, %v598
    %v663 = vmul.f32 %v599, %v599
    %v664 = vmul.f32 %v600, %v600
    %v665 = vmul.f32 %v601, %v601
    %v666 = vmul.f32 %v602, %v602
    %v667 = vmul.f32 %v603, %v603
    %v668 = vmul.f32 %v604, %v604
    %v669 = vmul.f32 %v605, %v605
    %v670 = vmul.f32 %v606, %v606
    %v671 = vmul.f32 %v607, %v607
    %v672 = vmul.f32 %v608, %v608
    %v673 = vmul.f32 %v609, %v609
    %v674 = vmul.f32 %v610, %v610
    %v675 = vmul.f32 %v611, %v611
    %v676 = vmul.f32 %v612, %v612
    %v677 = vmul.f32 %v613, %v613
    %v678 = vmul.f32 %v614, %v614
    %v679 = vmul.f32 %v615, %v615
    %v680 = vadd.f32 %v616, %v648
    %v681 = vadd.f32 %v617, %v649
    %v682 = vadd.f32 %v618, %v650
    %v683 = vadd.f32 %v619, %v651
    %v684 = vadd.f32 %v620, %v652
    %v685 = vadd.f32 %v621, %v653
    %v686 = vadd.f32 %v622, %v654
    %v687 = vadd.f32 %v623, %v655
    %v688 = vadd.f32 %v624, %v656
    %v689 = vadd.f32 %v625, %v657
    %v690 = vadd.f32 %v626, %v658
    %v691 = vadd.f32 %v627, %v659
    %v692 = vadd.f32 %v628, %v660
    %v693 = vadd.f32 %v629, %v661
    %v694 = vadd.f32 %v630, %v662
    %v695 = vadd.f32 %v631, %v663
    %v696 = vadd.f32 %v632, %v664
    %v697 = vadd.f32 %v633, %v665
    %v698 = vadd.f32 %v634, %v666
    %v699 = vadd.f32 %v635, %v667
    %v700 = vadd.f32 %v636, %v668
    %v701 = vadd.f32 %v637, %v669
    %v702 = vadd.f32 %v638, %v670
    %v703 = vadd.f32 %v639, %v671
    %v704 = vadd.f32 %v640, %v672
    %v705 = vadd.f32 %v641, %v673
    %v706 = vadd.f32 %v642, %v674
    %v707 = vadd.f32 %v643, %v675
    %v708 = vadd.f32 %v644, %v676
    %v709 = vadd.f32 %v645, %v677
    %v710 = vadd.f32 %v646, %v678
    %v711 = vadd.f32 %v647, %v679
    %v712 = vrsqrt.pop %v680
    %v713 = vmul.f32 %v680, %v712
    %vm714 = vcmp.eq.f32.partialorder %v680, inf
    %v715 = vsel %vm714, %v680, %v713
    %vm716 = vcmp.eq.f32.partialorder %v680, 0.0
    %v717 = vand.u32 %v680, 2147483648
    %v718 = vsel %vm716, %v717, %v715
    %v719 = vrsqrt.pop %v681
    %v720 = vmul.f32 %v681, %v719
    %vm721 = vcmp.eq.f32.partialorder %v681, inf
    %v722 = vsel %vm721, %v681, %v720
    %vm723 = vcmp.eq.f32.partialorder %v681, 0.0
    %v724 = vand.u32 %v681, 2147483648
    %v725 = vsel %vm723, %v724, %v722
    %v726 = vrsqrt.pop %v682
    %v727 = vmul.f32 %v682, %v726
    %vm728 = vcmp.eq.f32.partialorder %v682, inf
    %v729 = vsel %vm728, %v682, %v727
    %vm730 = vcmp.eq.f32.partialorder %v682, 0.0
    %v731 = vand.u32 %v682, 2147483648
    %v732 = vsel %vm730, %v731, %v729
    %v733 = vrsqrt.pop %v683
    %v734 = vmul.f32 %v683, %v733
    %vm735 = vcmp.eq.f32.partialorder %v683, inf
    %v736 = vsel %vm735, %v683, %v734
    %vm737 = vcmp.eq.f32.partialorder %v683, 0.0
    %v738 = vand.u32 %v683, 2147483648
    %v739 = vsel %vm737, %v738, %v736
    %v740 = vrsqrt.pop %v684
    %v741 = vmul.f32 %v684, %v740
    %vm742 = vcmp.eq.f32.partialorder %v684, inf
    %v743 = vsel %vm742, %v684, %v741
    %vm744 = vcmp.eq.f32.partialorder %v684, 0.0
    %v745 = vand.u32 %v684, 2147483648
    %v746 = vsel %vm744, %v745, %v743
    %v747 = vrsqrt.pop %v685
    %v748 = vmul.f32 %v685, %v747
    %vm749 = vcmp.eq.f32.partialorder %v685, inf
    %v750 = vsel %vm749, %v685, %v748
    %vm751 = vcmp.eq.f32.partialorder %v685, 0.0
    %v752 = vand.u32 %v685, 2147483648
    %v753 = vsel %vm751, %v752, %v750
    %v754 = vrsqrt.pop %v686
    %v755 = vmul.f32 %v686, %v754
    %vm756 = vcmp.eq.f32.partialorder %v686, inf
    %v757 = vsel %vm756, %v686, %v755
    %vm758 = vcmp.eq.f32.partialorder %v686, 0.0
    %v759 = vand.u32 %v686, 2147483648
    %v760 = vsel %vm758, %v759, %v757
    %v761 = vrsqrt.pop %v687
    %v762 = vmul.f32 %v687, %v761
    %vm763 = vcmp.eq.f32.partialorder %v687, inf
    %v764 = vsel %vm763, %v687, %v762
    %vm765 = vcmp.eq.f32.partialorder %v687, 0.0
    %v766 = vand.u32 %v687, 2147483648
    %v767 = vsel %vm765, %v766, %v764
    %v768 = vrsqrt.pop %v688
    %v769 = vmul.f32 %v688, %v768
    %vm770 = vcmp.eq.f32.partialorder %v688, inf
    %v771 = vsel %vm770, %v688, %v769
    %vm772 = vcmp.eq.f32.partialorder %v688, 0.0
    %v773 = vand.u32 %v688, 2147483648
    %v774 = vsel %vm772, %v773, %v771
    %v775 = vrsqrt.pop %v689
    %v776 = vmul.f32 %v689, %v775
    %vm777 = vcmp.eq.f32.partialorder %v689, inf
    %v778 = vsel %vm777, %v689, %v776
    %vm779 = vcmp.eq.f32.partialorder %v689, 0.0
    %v780 = vand.u32 %v689, 2147483648
    %v781 = vsel %vm779, %v780, %v778
    %v782 = vrsqrt.pop %v690
    %v783 = vmul.f32 %v690, %v782
    %vm784 = vcmp.eq.f32.partialorder %v690, inf
    %v785 = vsel %vm784, %v690, %v783
    %vm786 = vcmp.eq.f32.partialorder %v690, 0.0
    %v787 = vand.u32 %v690, 2147483648
    %v788 = vsel %vm786, %v787, %v785
    %v789 = vrsqrt.pop %v691
    %v790 = vmul.f32 %v691, %v789
    %vm791 = vcmp.eq.f32.partialorder %v691, inf
    %v792 = vsel %vm791, %v691, %v790
    %vm793 = vcmp.eq.f32.partialorder %v691, 0.0
    %v794 = vand.u32 %v691, 2147483648
    %v795 = vsel %vm793, %v794, %v792
    %v796 = vrsqrt.pop %v692
    %v797 = vmul.f32 %v692, %v796
    %vm798 = vcmp.eq.f32.partialorder %v692, inf
    %v799 = vsel %vm798, %v692, %v797
    %vm800 = vcmp.eq.f32.partialorder %v692, 0.0
    %v801 = vand.u32 %v692, 2147483648
    %v802 = vsel %vm800, %v801, %v799
    %v803 = vrsqrt.pop %v693
    %v804 = vmul.f32 %v693, %v803
    %vm805 = vcmp.eq.f32.partialorder %v693, inf
    %v806 = vsel %vm805, %v693, %v804
    %vm807 = vcmp.eq.f32.partialorder %v693, 0.0
    %v808 = vand.u32 %v693, 2147483648
    %v809 = vsel %vm807, %v808, %v806
    %v810 = vrsqrt.pop %v694
    %v811 = vmul.f32 %v694, %v810
    %vm812 = vcmp.eq.f32.partialorder %v694, inf
    %v813 = vsel %vm812, %v694, %v811
    %vm814 = vcmp.eq.f32.partialorder %v694, 0.0
    %v815 = vand.u32 %v694, 2147483648
    %v816 = vsel %vm814, %v815, %v813
    %v817 = vrsqrt.pop %v695
    %v818 = vmul.f32 %v695, %v817
    %vm819 = vcmp.eq.f32.partialorder %v695, inf
    %v820 = vsel %vm819, %v695, %v818
    %vm821 = vcmp.eq.f32.partialorder %v695, 0.0
    %v822 = vand.u32 %v695, 2147483648
    %v823 = vsel %vm821, %v822, %v820
    %v824 = vrsqrt.pop %v696
    %v825 = vmul.f32 %v696, %v824
    %vm826 = vcmp.eq.f32.partialorder %v696, inf
    %v827 = vsel %vm826, %v696, %v825
    %vm828 = vcmp.eq.f32.partialorder %v696, 0.0
    %v829 = vand.u32 %v696, 2147483648
    %v830 = vsel %vm828, %v829, %v827
    %v831 = vrsqrt.pop %v697
    %v832 = vmul.f32 %v697, %v831
    %vm833 = vcmp.eq.f32.partialorder %v697, inf
    %v834 = vsel %vm833, %v697, %v832
    %vm835 = vcmp.eq.f32.partialorder %v697, 0.0
    %v836 = vand.u32 %v697, 2147483648
    %v837 = vsel %vm835, %v836, %v834
    %v838 = vrsqrt.pop %v698
    %v839 = vmul.f32 %v698, %v838
    %vm840 = vcmp.eq.f32.partialorder %v698, inf
    %v841 = vsel %vm840, %v698, %v839
    %vm842 = vcmp.eq.f32.partialorder %v698, 0.0
    %v843 = vand.u32 %v698, 2147483648
    %v844 = vsel %vm842, %v843, %v841
    %v845 = vrsqrt.pop %v699
    %v846 = vmul.f32 %v699, %v845
    %vm847 = vcmp.eq.f32.partialorder %v699, inf
    %v848 = vsel %vm847, %v699, %v846
    %vm849 = vcmp.eq.f32.partialorder %v699, 0.0
    %v850 = vand.u32 %v699, 2147483648
    %v851 = vsel %vm849, %v850, %v848
    %v852 = vrsqrt.pop %v700
    %v853 = vmul.f32 %v700, %v852
    %vm854 = vcmp.eq.f32.partialorder %v700, inf
    %v855 = vsel %vm854, %v700, %v853
    %vm856 = vcmp.eq.f32.partialorder %v700, 0.0
    %v857 = vand.u32 %v700, 2147483648
    %v858 = vsel %vm856, %v857, %v855
    %v859 = vrsqrt.pop %v701
    %v860 = vmul.f32 %v701, %v859
    %vm861 = vcmp.eq.f32.partialorder %v701, inf
    %v862 = vsel %vm861, %v701, %v860
    %vm863 = vcmp.eq.f32.partialorder %v701, 0.0
    %v864 = vand.u32 %v701, 2147483648
    %v865 = vsel %vm863, %v864, %v862
    %v866 = vrsqrt.pop %v702
    %v867 = vmul.f32 %v702, %v866
    %vm868 = vcmp.eq.f32.partialorder %v702, inf
    %v869 = vsel %vm868, %v702, %v867
    %vm870 = vcmp.eq.f32.partialorder %v702, 0.0
    %v871 = vand.u32 %v702, 2147483648
    %v872 = vsel %vm870, %v871, %v869
    %v873 = vrsqrt.pop %v703
    %v874 = vmul.f32 %v703, %v873
    %vm875 = vcmp.eq.f32.partialorder %v703, inf
    %v876 = vsel %vm875, %v703, %v874
    %vm877 = vcmp.eq.f32.partialorder %v703, 0.0
    %v878 = vand.u32 %v703, 2147483648
    %v879 = vsel %vm877, %v878, %v876
    %v880 = vrsqrt.pop %v704
    %v881 = vmul.f32 %v704, %v880
    %vm882 = vcmp.eq.f32.partialorder %v704, inf
    %v883 = vsel %vm882, %v704, %v881
    %vm884 = vcmp.eq.f32.partialorder %v704, 0.0
    %v885 = vand.u32 %v704, 2147483648
    %v886 = vsel %vm884, %v885, %v883
    %v887 = vrsqrt.pop %v705
    %v888 = vmul.f32 %v705, %v887
    %vm889 = vcmp.eq.f32.partialorder %v705, inf
    %v890 = vsel %vm889, %v705, %v888
    %vm891 = vcmp.eq.f32.partialorder %v705, 0.0
    %v892 = vand.u32 %v705, 2147483648
    %v893 = vsel %vm891, %v892, %v890
    %v894 = vrsqrt.pop %v706
    %v895 = vmul.f32 %v706, %v894
    %vm896 = vcmp.eq.f32.partialorder %v706, inf
    %v897 = vsel %vm896, %v706, %v895
    %vm898 = vcmp.eq.f32.partialorder %v706, 0.0
    %v899 = vand.u32 %v706, 2147483648
    %v900 = vsel %vm898, %v899, %v897
    %v901 = vrsqrt.pop %v707
    %v902 = vmul.f32 %v707, %v901
    %vm903 = vcmp.eq.f32.partialorder %v707, inf
    %v904 = vsel %vm903, %v707, %v902
    %vm905 = vcmp.eq.f32.partialorder %v707, 0.0
    %v906 = vand.u32 %v707, 2147483648
    %v907 = vsel %vm905, %v906, %v904
    %v908 = vrsqrt.pop %v708
    %v909 = vmul.f32 %v708, %v908
    %vm910 = vcmp.eq.f32.partialorder %v708, inf
    %v911 = vsel %vm910, %v708, %v909
    %vm912 = vcmp.eq.f32.partialorder %v708, 0.0
    %v913 = vand.u32 %v708, 2147483648
    %v914 = vsel %vm912, %v913, %v911
    %v915 = vrsqrt.pop %v709
    %v916 = vmul.f32 %v709, %v915
    %vm917 = vcmp.eq.f32.partialorder %v709, inf
    %v918 = vsel %vm917, %v709, %v916
    %vm919 = vcmp.eq.f32.partialorder %v709, 0.0
    %v920 = vand.u32 %v709, 2147483648
    %v921 = vsel %vm919, %v920, %v918
    %v922 = vrsqrt.pop %v710
    %v923 = vmul.f32 %v710, %v922
    %vm924 = vcmp.eq.f32.partialorder %v710, inf
    %v925 = vsel %vm924, %v710, %v923
    %vm926 = vcmp.eq.f32.partialorder %v710, 0.0
    %v927 = vand.u32 %v710, 2147483648
    %v928 = vsel %vm926, %v927, %v925
    %v929 = vrsqrt.pop %v711
    %v930 = vmul.f32 %v711, %v929
    %vm931 = vcmp.eq.f32.partialorder %v711, inf
    %v932 = vsel %vm931, %v711, %v930
    %vm933 = vcmp.eq.f32.partialorder %v711, 0.0
    %v934 = vand.u32 %v711, 2147483648
    %v935 = vsel %vm933, %v934, %v932
    %v936 = vmul.f32 %v23, %v718
    %v937 = vmul.f32 %v24, %v725
    %v938 = vmul.f32 %v25, %v732
    %v939 = vmul.f32 %v26, %v739
    %v940 = vmul.f32 %v27, %v746
    %v941 = vmul.f32 %v28, %v753
    %v942 = vmul.f32 %v29, %v760
    %v943 = vmul.f32 %v30, %v767
    %v944 = vmul.f32 %v31, %v774
    %v945 = vmul.f32 %v32, %v781
    %v946 = vmul.f32 %v33, %v788
    %v947 = vmul.f32 %v34, %v795
    %v948 = vmul.f32 %v35, %v802
    %v949 = vmul.f32 %v36, %v809
    %v950 = vmul.f32 %v37, %v816
    %v951 = vmul.f32 %v38, %v823
    %v952 = vmul.f32 %v39, %v830
    %v953 = vmul.f32 %v40, %v837
    %v954 = vmul.f32 %v41, %v844
    %v955 = vmul.f32 %v42, %v851
    %v956 = vmul.f32 %v43, %v858
    %v957 = vmul.f32 %v44, %v865
    %v958 = vmul.f32 %v45, %v872
    %v959 = vmul.f32 %v46, %v879
    %v960 = vmul.f32 %v47, %v886
    %v961 = vmul.f32 %v48, %v893
    %v962 = vmul.f32 %v49, %v900
    %v963 = vmul.f32 %v50, %v907
    %v964 = vmul.f32 %v51, %v914
    %v965 = vmul.f32 %v52, %v921
    %v966 = vmul.f32 %v53, %v928
    %v967 = vmul.f32 %v54, %v935
    %v968 = vadd.f32 %v936, %v937
    %v969 = vadd.f32 %v968, %v938
    %v970 = vadd.f32 %v969, %v939
    %v971 = vadd.f32 %v970, %v940
    %v972 = vadd.f32 %v971, %v941
    %v973 = vadd.f32 %v972, %v942
    %v974 = vadd.f32 %v973, %v943
    %v975 = vadd.f32 %v974, %v944
    %v976 = vadd.f32 %v975, %v945
    %v977 = vadd.f32 %v976, %v946
    %v978 = vadd.f32 %v977, %v947
    %v979 = vadd.f32 %v978, %v948
    %v980 = vadd.f32 %v979, %v949
    %v981 = vadd.f32 %v980, %v950
    %v982 = vadd.f32 %v981, %v951
    %v983 = vadd.f32 %v982, %v952
    %v984 = vadd.f32 %v983, %v953
    %v985 = vadd.f32 %v984, %v954
    %v986 = vadd.f32 %v985, %v955
    %v987 = vadd.f32 %v986, %v956
    %v988 = vadd.f32 %v987, %v957
    %v989 = vadd.f32 %v988, %v958
    %v990 = vadd.f32 %v989, %v959
    %v991 = vadd.f32 %v990, %v960
    %v992 = vadd.f32 %v991, %v961
    %v993 = vadd.f32 %v992, %v962
    %v994 = vadd.f32 %v993, %v963
    %v995 = vadd.f32 %v994, %v964
    %v996 = vadd.f32 %v995, %v965
    %v997 = vadd.f32 %v996, %v966
    %v998 = vadd.f32 %v997, %v967
    %v999 = vrot.slane %v998, 4
    %v1000 = vadd.f32 %v998, %v999
    %v1001 = vrot.slane %v1000, 2
    %v1002 = vadd.f32 %v1000, %v1001
    %v1003 = vrot.slane %v1002, 1
    %v1004 = vadd.f32 %v1002, %v1003
    %v1005 = vmul.f32 %v55, %v718
    %v1006 = vmul.f32 %v56, %v725
    %v1007 = vmul.f32 %v57, %v732
    %v1008 = vmul.f32 %v58, %v739
    %v1009 = vmul.f32 %v59, %v746
    %v1010 = vmul.f32 %v60, %v753
    %v1011 = vmul.f32 %v61, %v760
    %v1012 = vmul.f32 %v62, %v767
    %v1013 = vmul.f32 %v63, %v774
    %v1014 = vmul.f32 %v64, %v781
    %v1015 = vmul.f32 %v65, %v788
    %v1016 = vmul.f32 %v66, %v795
    %v1017 = vmul.f32 %v67, %v802
    %v1018 = vmul.f32 %v68, %v809
    %v1019 = vmul.f32 %v69, %v816
    %v1020 = vmul.f32 %v70, %v823
    %v1021 = vmul.f32 %v71, %v830
    %v1022 = vmul.f32 %v72, %v837
    %v1023 = vmul.f32 %v73, %v844
    %v1024 = vmul.f32 %v74, %v851
    %v1025 = vmul.f32 %v75, %v858
    %v1026 = vmul.f32 %v76, %v865
    %v1027 = vmul.f32 %v77, %v872
    %v1028 = vmul.f32 %v78, %v879
    %v1029 = vmul.f32 %v79, %v886
    %v1030 = vmul.f32 %v80, %v893
    %v1031 = vmul.f32 %v81, %v900
    %v1032 = vmul.f32 %v82, %v907
    %v1033 = vmul.f32 %v83, %v914
    %v1034 = vmul.f32 %v84, %v921
    %v1035 = vmul.f32 %v85, %v928
    %v1036 = vmul.f32 %v86, %v935
    %v1037 = vadd.f32 %v1005, %v1006
    %v1038 = vadd.f32 %v1037, %v1007
    %v1039 = vadd.f32 %v1038, %v1008
    %v1040 = vadd.f32 %v1039, %v1009
    %v1041 = vadd.f32 %v1040, %v1010
    %v1042 = vadd.f32 %v1041, %v1011
    %v1043 = vadd.f32 %v1042, %v1012
    %v1044 = vadd.f32 %v1043, %v1013
    %v1045 = vadd.f32 %v1044, %v1014
    %v1046 = vadd.f32 %v1045, %v1015
    %v1047 = vadd.f32 %v1046, %v1016
    %v1048 = vadd.f32 %v1047, %v1017
    %v1049 = vadd.f32 %v1048, %v1018
    %v1050 = vadd.f32 %v1049, %v1019
    %v1051 = vadd.f32 %v1050, %v1020
    %v1052 = vadd.f32 %v1051, %v1021
    %v1053 = vadd.f32 %v1052, %v1022
    %v1054 = vadd.f32 %v1053, %v1023
    %v1055 = vadd.f32 %v1054, %v1024
    %v1056 = vadd.f32 %v1055, %v1025
    %v1057 = vadd.f32 %v1056, %v1026
    %v1058 = vadd.f32 %v1057, %v1027
    %v1059 = vadd.f32 %v1058, %v1028
    %v1060 = vadd.f32 %v1059, %v1029
    %v1061 = vadd.f32 %v1060, %v1030
    %v1062 = vadd.f32 %v1061, %v1031
    %v1063 = vadd.f32 %v1062, %v1032
    %v1064 = vadd.f32 %v1063, %v1033
    %v1065 = vadd.f32 %v1064, %v1034
    %v1066 = vadd.f32 %v1065, %v1035
    %v1067 = vadd.f32 %v1066, %v1036
    %v1068 = vrot.slane %v1067, 4
    %v1069 = vadd.f32 %v1067, %v1068
    %v1070 = vrot.slane %v1069, 2
    %v1071 = vadd.f32 %v1069, %v1070
    %v1072 = vrot.slane %v1071, 1
    %v1073 = vadd.f32 %v1071, %v1072
    %v1074 = vmul.f32 %v87, %v718
    %v1075 = vmul.f32 %v88, %v725
    %v1076 = vmul.f32 %v89, %v732
    %v1077 = vmul.f32 %v90, %v739
    %v1078 = vmul.f32 %v91, %v746
    %v1079 = vmul.f32 %v92, %v753
    %v1080 = vmul.f32 %v93, %v760
    %v1081 = vmul.f32 %v94, %v767
    %v1082 = vmul.f32 %v95, %v774
    %v1083 = vmul.f32 %v96, %v781
    %v1084 = vmul.f32 %v97, %v788
    %v1085 = vmul.f32 %v98, %v795
    %v1086 = vmul.f32 %v99, %v802
    %v1087 = vmul.f32 %v100, %v809
    %v1088 = vmul.f32 %v101, %v816
    %v1089 = vmul.f32 %v102, %v823
    %v1090 = vmul.f32 %v103, %v830
    %v1091 = vmul.f32 %v104, %v837
    %v1092 = vmul.f32 %v105, %v844
    %v1093 = vmul.f32 %v106, %v851
    %v1094 = vmul.f32 %v107, %v858
    %v1095 = vmul.f32 %v108, %v865
    %v1096 = vmul.f32 %v109, %v872
    %v1097 = vmul.f32 %v110, %v879
    %v1098 = vmul.f32 %v111, %v886
    %v1099 = vmul.f32 %v112, %v893
    %v1100 = vmul.f32 %v113, %v900
    %v1101 = vmul.f32 %v114, %v907
    %v1102 = vmul.f32 %v115, %v914
    %v1103 = vmul.f32 %v116, %v921
    %v1104 = vmul.f32 %v117, %v928
    %v1105 = vmul.f32 %v118, %v935
    %v1106 = vadd.f32 %v1074, %v1075
    %v1107 = vadd.f32 %v1106, %v1076
    %v1108 = vadd.f32 %v1107, %v1077
    %v1109 = vadd.f32 %v1108, %v1078
    %v1110 = vadd.f32 %v1109, %v1079
    %v1111 = vadd.f32 %v1110, %v1080
    %v1112 = vadd.f32 %v1111, %v1081
    %v1113 = vadd.f32 %v1112, %v1082
    %v1114 = vadd.f32 %v1113, %v1083
    %v1115 = vadd.f32 %v1114, %v1084
    %v1116 = vadd.f32 %v1115, %v1085
    %v1117 = vadd.f32 %v1116, %v1086
    %v1118 = vadd.f32 %v1117, %v1087
    %v1119 = vadd.f32 %v1118, %v1088
    %v1120 = vadd.f32 %v1119, %v1089
    %v1121 = vadd.f32 %v1120, %v1090
    %v1122 = vadd.f32 %v1121, %v1091
    %v1123 = vadd.f32 %v1122, %v1092
    %v1124 = vadd.f32 %v1123, %v1093
    %v1125 = vadd.f32 %v1124, %v1094
    %v1126 = vadd.f32 %v1125, %v1095
    %v1127 = vadd.f32 %v1126, %v1096
    %v1128 = vadd.f32 %v1127, %v1097
    %v1129 = vadd.f32 %v1128, %v1098
    %v1130 = vadd.f32 %v1129, %v1099
    %v1131 = vadd.f32 %v1130, %v1100
    %v1132 = vadd.f32 %v1131, %v1101
    %v1133 = vadd.f32 %v1132, %v1102
    %v1134 = vadd.f32 %v1133, %v1103
    %v1135 = vadd.f32 %v1134, %v1104
    %v1136 = vadd.f32 %v1135, %v1105
    %v1137 = vrot.slane %v1136, 4
    %v1138 = vadd.f32 %v1136, %v1137
    %v1139 = vrot.slane %v1138, 2
    %v1140 = vadd.f32 %v1138, %v1139
    %v1141 = vrot.slane %v1140, 1
    %v1142 = vadd.f32 %v1140, %v1141
    %v1143 = vmul.f32 %v1004, %v1004
    %v1144 = vmul.f32 %v1073, %v1073
    %v1145 = vadd.f32 %v1143, %v1144
    %v1146 = vmul.f32 %v1142, %v1142
    %v1147 = vadd.f32 %v1145, %v1146
    %v1148 = vrsqrt.pop %v1147
    %v1149 = vmul.f32 %v1147, %v1148
    %vm1150 = vcmp.eq.f32.partialorder %v1147, inf
    %v1151 = vsel %vm1150, %v1147, %v1149
    %vm1152 = vcmp.eq.f32.partialorder %v1147, 0.0
    %v1153 = vand.u32 %v1147, 2147483648
    %v1154 = vsel %vm1152, %v1153, %v1151
    %v1155 = vmul.f32 %v1154, 0.70710677
    %v1156 = vadd.f32 %v551, %v1155
    %1157 = vst [vmem:[#allocation5] sm:$0x1] %v1156
    // Predicated region
    $region10: #{tpu_custom_call.1} parent=1 // pred_check
      _
    $region11: #{tpu_custom_call.1} parent=1 // pred_check_branch
      %1159 = sbr.rel (0) target = $region13
    $region12: #{tpu_custom_call.1} parent=1 // pred_region
      %s1161 = ssub.s32 16, 16
      %1162 = vsyncadd [#allocation4], %s1161
      %s1164 = sshll.u32 [#allocation5], 4
      %s1165 = int_to_ptr.vmem [resolvable:$true] %s1164
      %1167 = dma.vmem_to_hbm [thread:$0]  %s1165, 16, %s1, [#allocation4]
    $region13: #{tpu_custom_call.1} parent=1 // pred_fallthru
      _
    // Predicated region
    $region14: #{tpu_custom_call.1} parent=1 // pred_check
      _
    $region15: #{tpu_custom_call.1} parent=1 // pred_check_branch
      %1169 = sbr.rel (0) target = $region17
    $region16: #{tpu_custom_call.1} parent=1 // pred_region
      %1170 = dma.done [#allocation4], 16
    $region17: #{tpu_custom_call.1} parent=1 // pred_fallthru
      _
    %1171 = vsyncpa [#allocation3], 1
    %1172 = vsyncpa [#allocation4], 1

</llo_original>
